<compile_context>
chip_gen: v5e
topology: v5e:2x2
jax: 0.10.0
libtpu: 0.0.40
codegen_flags: <defaults>
</compile_context>

<pallas_src>
import jax
import jax.numpy as jnp
from jax.experimental import pallas as pl
from jax.experimental.pallas import tpu as pltpu


_LANE = 128
_EMB = 32  # hidden width of the embedding layer (fixed by the model)


def _round_up(x, m=_LANE):
    return ((x + m - 1) // m) * m


def _sigmoid_bf16(x):
    # sigmoid(x) == 0.5 * tanh(0.5 * x) + 0.5  -> one EUP transcendental / elem.
    return (0.5 * jnp.tanh(0.5 * x) + 0.5).astype(jnp.bfloat16)


def _mlp_kernel(x_ref, be_ref,
                w1_ref, b1_ref, w2_ref, b2_ref,
                w3_ref, b3_ref, w4_ref, b4_ref,
                o_ref):
    """One batch tile of the Linear+Sigmoid chain; weights are VMEM-resident."""

    def lin(h, w_ref, b_ref):
        # bf16 x bf16 matmul with f32 accumulation on the MXU.
        return jnp.dot(h, w_ref[...], preferred_element_type=jnp.float32) + b_ref[...]

    # Layer 0: x_ref already holds the gathered embedding rows W_e[x, :]
    # (== one_hot(x) @ W_e), so only bias-add + sigmoid remain.
    h = _sigmoid_bf16(x_ref[...].astype(jnp.float32) + be_ref[...])
    h = _sigmoid_bf16(lin(h, w1_ref, b1_ref))            # 32 -> 2V
    h = _sigmoid_bf16(lin(h, w2_ref, b2_ref))            # 2V -> 4V
    h = _sigmoid_bf16(lin(h, w3_ref, b3_ref))            # 4V -> 2V
    o_ref[...] = jax.nn.sigmoid(lin(h, w4_ref, b4_ref))  # 2V -> V (exact, f32)


def _pad_params(params):
    """(W_e, b_e) kept at real shapes (bf16 / f32); the 4 MLP layers get their
    V-derived dims zero-padded to multiples of 128 (padding is inert)."""
    (we, be0), rest = params[0], params[1:]
    we_p = we.astype(jnp.bfloat16)                     # [V, 32]
    be_p = be0.astype(jnp.float32).reshape(1, -1)      # [1, 32]
    padded = []
    for idx, (w, b) in enumerate(rest):
        d_in, d_out = w.shape
        in_pad = d_in if idx == 0 else _round_up(d_in)   # layer-1 K is the real 32
        out_pad = _round_up(d_out)
        wp = jnp.zeros((in_pad, out_pad), jnp.bfloat16).at[:d_in, :d_out].set(
            w.astype(jnp.bfloat16))
        bp = jnp.zeros((1, out_pad), jnp.float32).at[0, :d_out].set(
            b.astype(jnp.float32))
        padded.append((wp, bp))
    return (we_p, be_p), padded


def _vmem_capacity_bytes():
    try:
        cap = getattr(pltpu.get_tpu_info(), "vmem_capacity_bytes", None)
        if cap:
            return int(cap)
    except Exception:
        pass
    return 64 << 20  # conservative fallback: v7x per-TensorCore VMEM


def _vmem_needed(tile_b, resident_bytes, chain_dims, v_pad):
    in_out_tiles = 2 * tile_b * (_EMB * 2 + v_pad * 4)   # double-buffered in/out DMA tiles
    act_tmp = tile_b * (2 * sum(chain_dims[:-1]) + 8 * max(chain_dims))
    return resident_bytes + in_out_tiles + act_tmp + (4 << 20)


def _choose_batch_tiling(B, fits):
    """Pick (b_pad, tile_b): pad B only to a multiple of 8, use the largest
    VMEM-fitting tile, and prefer >= 2 grid steps when the batch allows it."""
    b8 = _round_up(B, 8)
    cap = 8
    for tb in (8, 16, 32, 64, 128, 256, 512):
        if fits(tb):
            cap = tb
    tile_b = min(cap, b8)
    b_pad = _round_up(b8, tile_b)
    if b_pad // tile_b < 2 and b_pad >= 16 and (b_pad // 2) % 8 == 0:
        tile_b = b_pad // 2          # give megacore / DMA pipeline >= 2 steps
    return b_pad, tile_b


def linear_model_forward(x_tokens, params, vocab_size):
    """x_tokens: int32 [B].  Returns float32 [B, vocab_size]."""
    B = x_tokens.shape[0]
    (we, be), rest = _pad_params(params)
    flat_params = [be]
    for w, b in rest:
        flat_params += [w, b]

    v_pad = int(rest[-1][0].shape[1])
    chain_dims = [_EMB] + [int(w.shape[1]) for w, _ in rest]
    resident_bytes = sum(int(p.size) * p.dtype.itemsize for p in flat_params)

    vmem_phys = _vmem_capacity_bytes()
    vmem_usable = max(16 << 20, vmem_phys - (8 << 20))

    b_pad, tile_b = _choose_batch_tiling(
        B, lambda tb: _vmem_needed(tb, resident_bytes, chain_dims, v_pad) <= vmem_usable)

    # Embedding-layer input: one_hot(x, V) @ W_e == W_e[x, :] (row gather).
    # TODO(synk): move this gather in-kernel (scalar-prefetch x_tokens + take
    # from the VMEM-resident table) to drop the emb_rows HBM round-trip.
    emb_rows = jnp.take(we, x_tokens, axis=0)            # [B, 32] bf16
    if b_pad != B:
        emb_rows = jnp.pad(emb_rows, ((0, b_pad - B), (0, 0)))

    grid = (b_pad // tile_b,)
    act_spec = pl.BlockSpec((tile_b, _EMB), lambda i: (i, 0))
    out_spec = pl.BlockSpec((tile_b, v_pad), lambda i: (i, 0))

    flops = 2 * b_pad * sum(int(w.shape[0]) * int(w.shape[1]) for w, _ in rest)
    trans = b_pad * sum(chain_dims)                       # one tanh/sigmoid per elem
    bytes_accessed = (int(emb_rows.size) * emb_rows.dtype.itemsize
                      + resident_bytes + b_pad * v_pad * 4)

    def build_and_call(single_buffer_weights):
        if single_buffer_weights:
            # Constant index_map -> weights/biases stay VMEM-resident; one
            # buffer suffices since they never change across grid steps.
            res_specs = [pl.BlockSpec(p.shape, lambda i: (0, 0),
                                      pipeline_mode=pl.Buffered(1))
                         for p in flat_params]
            res_factor = 1
        else:
            res_specs = [pl.BlockSpec(p.shape, lambda i: (0, 0))
                         for p in flat_params]
            res_factor = 2
        needed = (_vmem_needed(tile_b, resident_bytes, chain_dims, v_pad)
                  + (res_factor - 1) * resident_bytes)
        vmem_limit = int(min(vmem_usable, needed))
        return pl.pallas_call(
            _mlp_kernel,
            out_shape=jax.ShapeDtypeStruct((b_pad, v_pad), jnp.float32),
            grid_spec=pltpu.PrefetchScalarGridSpec(
                num_scalar_prefetch=0,
                grid=grid,
                in_specs=[act_spec] + res_specs,
                out_specs=out_spec,
            ),
            compiler_params=pltpu.CompilerParams(
                dimension_semantics=("parallel",),   # batch tiles shard on v7x's 2 TCs
                vmem_limit_bytes=vmem_limit,
            ),
            cost_estimate=pl.CostEstimate(
                flops=int(flops), transcendentals=int(trans),
                bytes_accessed=int(bytes_accessed)),
        )(emb_rows, *flat_params)

    try:
        out = build_and_call(True)
    except Exception:
        # TODO(synk): some Pallas builds may reject pipeline_mode on constant
        # specs; fall back to default (double-buffered) resident weights.
        out = build_and_call(False)

    return out[:B, :vocab_size]


def init_params(key, vocab_size):
    """Deterministic init matching the PyTorch layer shapes.

    Weights stored as [in, out] (transpose of torch's [out, in]); biases [out]."""
    dims_in = [vocab_size, 32, 2 * vocab_size, 4 * vocab_size, 2 * vocab_size]
    dims_out = [32, 2 * vocab_size, 4 * vocab_size, 2 * vocab_size, vocab_size]
    params = []
    for d_in, d_out in zip(dims_in, dims_out):
        key, kw, kb = jax.random.split(key, 3)
        bound = 1.0 / jnp.sqrt(d_in)  # torch nn.Linear default uniform bound
        w = jax.random.uniform(kw, (d_in, d_out), jnp.float32, -bound, bound)
        b = jax.random.uniform(kb, (d_out,), jnp.float32, -bound, bound)
        params.append((w, b))
    return params


def _reference_forward(x_tokens, params):
    """Plain-JAX reference using the same bf16-cast weights the kernel uses."""
    def w16(w):
        return w.astype(jnp.bfloat16).astype(jnp.float32)
    (we, be0), rest = params[0], params[1:]
    h = jax.nn.sigmoid(w16(we)[x_tokens] + be0)        # one_hot @ W_e == W_e[x]
    for w, b in rest:
        h = jax.nn.sigmoid(h @ w16(w) + b)
    return h


if __name__ == "__main__":
    vocab_size = 16
    batch = 8

    key = jax.random.PRNGKey(0)
    key, k_tok = jax.random.split(key)
    x_tokens = jax.random.randint(k_tok, (batch,), 0, vocab_size, dtype=jnp.int32)
    params = init_params(key, vocab_size)

    out = linear_model_forward(x_tokens, params, vocab_size)
    out = jax.block_until_ready(out)

    assert out.shape == (batch, vocab_size)
    assert out.dtype == jnp.float32

    ref = _reference_forward(x_tokens, params)
    max_err = float(jnp.max(jnp.abs(out - ref)))
    assert max_err < 5e-2, f"max abs err {max_err}"

    print("KERNEL_OK")
</pallas_src>

<mosaic_0001>
module attributes {stable_mosaic.version = 11 : i64} {
  func.func @_mlp_kernel(%arg0: i32, %arg1: memref<8x32xbf16, #tpu.memory_space<vmem>>, %arg2: memref<1x32xf32, #tpu.memory_space<vmem>>, %arg3: memref<32x128xbf16, #tpu.memory_space<vmem>>, %arg4: memref<1x128xf32, #tpu.memory_space<vmem>>, %arg5: memref<128x128xbf16, #tpu.memory_space<vmem>>, %arg6: memref<1x128xf32, #tpu.memory_space<vmem>>, %arg7: memref<128x128xbf16, #tpu.memory_space<vmem>>, %arg8: memref<1x128xf32, #tpu.memory_space<vmem>>, %arg9: memref<128x128xbf16, #tpu.memory_space<vmem>>, %arg10: memref<1x128xf32, #tpu.memory_space<vmem>>, %arg11: memref<8x128xf32, #tpu.memory_space<vmem>>) attributes {dimension_semantics = [#tpu.dimension_semantics<parallel>], iteration_bounds = array<i64: 1>, scalar_prefetch = 0 : i64, scratch_operands = 0 : i64, tpu.core_type = #tpu.core_type<tc>, window_params = [{transform_indices = @transform_0, window_bounds = array<i64: 8, 32>}, {pipeline_mode = #tpu.pipeline_mode<synchronous>, transform_indices = @transform_1, window_bounds = array<i64: 1, 32>}, {pipeline_mode = #tpu.pipeline_mode<synchronous>, transform_indices = @transform_2, window_bounds = array<i64: 32, 128>}, {pipeline_mode = #tpu.pipeline_mode<synchronous>, transform_indices = @transform_3, window_bounds = array<i64: 1, 128>}, {pipeline_mode = #tpu.pipeline_mode<synchronous>, transform_indices = @transform_4, window_bounds = array<i64: 128, 128>}, {pipeline_mode = #tpu.pipeline_mode<synchronous>, transform_indices = @transform_5, window_bounds = array<i64: 1, 128>}, {pipeline_mode = #tpu.pipeline_mode<synchronous>, transform_indices = @transform_6, window_bounds = array<i64: 128, 128>}, {pipeline_mode = #tpu.pipeline_mode<synchronous>, transform_indices = @transform_7, window_bounds = array<i64: 1, 128>}, {pipeline_mode = #tpu.pipeline_mode<synchronous>, transform_indices = @transform_8, window_bounds = array<i64: 128, 128>}, {pipeline_mode = #tpu.pipeline_mode<synchronous>, transform_indices = @transform_9, window_bounds = array<i64: 1, 128>}, {transform_indices = @transform_10, window_bounds = array<i64: 8, 128>}]} {
    %c0 = arith.constant 0 : index
    %c0_0 = arith.constant 0 : index
    %0 = vector.load %arg1[%c0, %c0_0] : memref<8x32xbf16, #tpu.memory_space<vmem>>, vector<8x32xbf16>
    %1 = arith.extf %0 : vector<8x32xbf16> to vector<8x32xf32>
    %c0_1 = arith.constant 0 : index
    %c0_2 = arith.constant 0 : index
    %2 = vector.load %arg2[%c0_1, %c0_2] : memref<1x32xf32, #tpu.memory_space<vmem>>, vector<1x32xf32>
    %3 = vector.broadcast %2 : vector<1x32xf32> to vector<8x32xf32>
    %4 = arith.addf %1, %3 : vector<8x32xf32>
    %cst = arith.constant 5.000000e-01 : f32
    %5 = vector.broadcast %cst : f32 to vector<8x32xf32>
    %6 = arith.mulf %5, %4 : vector<8x32xf32>
    %7 = math.tanh %6 : vector<8x32xf32>
    %cst_3 = arith.constant 5.000000e-01 : f32
    %8 = vector.broadcast %cst_3 : f32 to vector<8x32xf32>
    %9 = arith.mulf %8, %7 : vector<8x32xf32>
    %cst_4 = arith.constant 5.000000e-01 : f32
    %10 = vector.broadcast %cst_4 : f32 to vector<8x32xf32>
    %11 = arith.addf %9, %10 : vector<8x32xf32>
    %12 = arith.truncf %11 : vector<8x32xf32> to vector<8x32xbf16>
    %c0_5 = arith.constant 0 : index
    %c0_6 = arith.constant 0 : index
    %13 = vector.load %arg3[%c0_5, %c0_6] : memref<32x128xbf16, #tpu.memory_space<vmem>>, vector<32x128xbf16>
    %cst_7 = arith.constant dense<0.000000e+00> : vector<8x128xf32>
    %14 = tpu.matmul %12, %13, %cst_7 {dimension_numbers = #tpu.dot_dimension_numbers<[1], [0], [0], [1], [0, 0, 1, 1], [], []>} : vector<8x32xbf16>, vector<32x128xbf16>, vector<8x128xf32> -> vector<8x128xf32>
    %c0_8 = arith.constant 0 : index
    %c0_9 = arith.constant 0 : index
    %15 = vector.load %arg4[%c0_8, %c0_9] : memref<1x128xf32, #tpu.memory_space<vmem>>, vector<1x128xf32>
    %16 = vector.broadcast %15 : vector<1x128xf32> to vector<8x128xf32>
    %17 = arith.addf %14, %16 : vector<8x128xf32>
    %cst_10 = arith.constant 5.000000e-01 : f32
    %18 = vector.broadcast %cst_10 : f32 to vector<8x128xf32>
    %19 = arith.mulf %18, %17 : vector<8x128xf32>
    %20 = math.tanh %19 : vector<8x128xf32>
    %cst_11 = arith.constant 5.000000e-01 : f32
    %21 = vector.broadcast %cst_11 : f32 to vector<8x128xf32>
    %22 = arith.mulf %21, %20 : vector<8x128xf32>
    %cst_12 = arith.constant 5.000000e-01 : f32
    %23 = vector.broadcast %cst_12 : f32 to vector<8x128xf32>
    %24 = arith.addf %22, %23 : vector<8x128xf32>
    %25 = arith.truncf %24 : vector<8x128xf32> to vector<8x128xbf16>
    %c0_13 = arith.constant 0 : index
    %c0_14 = arith.constant 0 : index
    %26 = vector.load %arg5[%c0_13, %c0_14] : memref<128x128xbf16, #tpu.memory_space<vmem>>, vector<128x128xbf16>
    %cst_15 = arith.constant dense<0.000000e+00> : vector<8x128xf32>
    %27 = tpu.matmul %25, %26, %cst_15 {dimension_numbers = #tpu.dot_dimension_numbers<[1], [0], [0], [1], [0, 0, 1, 1], [], []>} : vector<8x128xbf16>, vector<128x128xbf16>, vector<8x128xf32> -> vector<8x128xf32>
    %c0_16 = arith.constant 0 : index
    %c0_17 = arith.constant 0 : index
    %28 = vector.load %arg6[%c0_16, %c0_17] : memref<1x128xf32, #tpu.memory_space<vmem>>, vector<1x128xf32>
    %29 = vector.broadcast %28 : vector<1x128xf32> to vector<8x128xf32>
    %30 = arith.addf %27, %29 : vector<8x128xf32>
    %cst_18 = arith.constant 5.000000e-01 : f32
    %31 = vector.broadcast %cst_18 : f32 to vector<8x128xf32>
    %32 = arith.mulf %31, %30 : vector<8x128xf32>
    %33 = math.tanh %32 : vector<8x128xf32>
    %cst_19 = arith.constant 5.000000e-01 : f32
    %34 = vector.broadcast %cst_19 : f32 to vector<8x128xf32>
    %35 = arith.mulf %34, %33 : vector<8x128xf32>
    %cst_20 = arith.constant 5.000000e-01 : f32
    %36 = vector.broadcast %cst_20 : f32 to vector<8x128xf32>
    %37 = arith.addf %35, %36 : vector<8x128xf32>
    %38 = arith.truncf %37 : vector<8x128xf32> to vector<8x128xbf16>
    %c0_21 = arith.constant 0 : index
    %c0_22 = arith.constant 0 : index
    %39 = vector.load %arg7[%c0_21, %c0_22] : memref<128x128xbf16, #tpu.memory_space<vmem>>, vector<128x128xbf16>
    %cst_23 = arith.constant dense<0.000000e+00> : vector<8x128xf32>
    %40 = tpu.matmul %38, %39, %cst_23 {dimension_numbers = #tpu.dot_dimension_numbers<[1], [0], [0], [1], [0, 0, 1, 1], [], []>} : vector<8x128xbf16>, vector<128x128xbf16>, vector<8x128xf32> -> vector<8x128xf32>
    %c0_24 = arith.constant 0 : index
    %c0_25 = arith.constant 0 : index
    %41 = vector.load %arg8[%c0_24, %c0_25] : memref<1x128xf32, #tpu.memory_space<vmem>>, vector<1x128xf32>
    %42 = vector.broadcast %41 : vector<1x128xf32> to vector<8x128xf32>
    %43 = arith.addf %40, %42 : vector<8x128xf32>
    %cst_26 = arith.constant 5.000000e-01 : f32
    %44 = vector.broadcast %cst_26 : f32 to vector<8x128xf32>
    %45 = arith.mulf %44, %43 : vector<8x128xf32>
    %46 = math.tanh %45 : vector<8x128xf32>
    %cst_27 = arith.constant 5.000000e-01 : f32
    %47 = vector.broadcast %cst_27 : f32 to vector<8x128xf32>
    %48 = arith.mulf %47, %46 : vector<8x128xf32>
    %cst_28 = arith.constant 5.000000e-01 : f32
    %49 = vector.broadcast %cst_28 : f32 to vector<8x128xf32>
    %50 = arith.addf %48, %49 : vector<8x128xf32>
    %51 = arith.truncf %50 : vector<8x128xf32> to vector<8x128xbf16>
    %c0_29 = arith.constant 0 : index
    %c0_30 = arith.constant 0 : index
    %52 = vector.load %arg9[%c0_29, %c0_30] : memref<128x128xbf16, #tpu.memory_space<vmem>>, vector<128x128xbf16>
    %cst_31 = arith.constant dense<0.000000e+00> : vector<8x128xf32>
    %53 = tpu.matmul %51, %52, %cst_31 {dimension_numbers = #tpu.dot_dimension_numbers<[1], [0], [0], [1], [0, 0, 1, 1], [], []>} : vector<8x128xbf16>, vector<128x128xbf16>, vector<8x128xf32> -> vector<8x128xf32>
    %c0_32 = arith.constant 0 : index
    %c0_33 = arith.constant 0 : index
    %54 = vector.load %arg10[%c0_32, %c0_33] : memref<1x128xf32, #tpu.memory_space<vmem>>, vector<1x128xf32>
    %55 = vector.broadcast %54 : vector<1x128xf32> to vector<8x128xf32>
    %56 = arith.addf %53, %55 : vector<8x128xf32>
    %57 = arith.negf %56 : vector<8x128xf32>
    %58 = math.exp %57 : vector<8x128xf32>
    %cst_34 = arith.constant 1.000000e+00 : f32
    %59 = vector.broadcast %cst_34 : f32 to vector<8x128xf32>
    %60 = arith.addf %59, %58 : vector<8x128xf32>
    %61 = arith.divf %59, %60 : vector<8x128xf32>
    %c0_35 = arith.constant 0 : index
    %c0_36 = arith.constant 0 : index
    %62 = vector.load %arg11[%c0_35, %c0_36] : memref<8x128xf32, #tpu.memory_space<vmem>>, vector<8x128xf32>
    tpu.vector_store %arg11[%c0_35, %c0_36], %61 {strides = array<i32>} : memref<8x128xf32, #tpu.memory_space<vmem>>, vector<8x128xf32>,
    return
  }
  func.func @transform_0(%arg0: i32) -> (i32, i32) {
    %c0_i32 = arith.constant 0 : i32
    %c0_i32_0 = arith.constant 0 : i32
    return %arg0, %c0_i32 : i32, i32
  }
  func.func @transform_1(%arg0: i32) -> (i32, i32) {
    %c0_i32 = arith.constant 0 : i32
    %c0_i32_0 = arith.constant 0 : i32
    %c0_i32_1 = arith.constant 0 : i32
    return %c0_i32, %c0_i32_0 : i32, i32
  }
  func.func @transform_2(%arg0: i32) -> (i32, i32) {
    %c0_i32 = arith.constant 0 : i32
    %c0_i32_0 = arith.constant 0 : i32
    %c0_i32_1 = arith.constant 0 : i32
    return %c0_i32, %c0_i32_0 : i32, i32
  }
  func.func @transform_3(%arg0: i32) -> (i32, i32) {
    %c0_i32 = arith.constant 0 : i32
    %c0_i32_0 = arith.constant 0 : i32
    %c0_i32_1 = arith.constant 0 : i32
    return %c0_i32, %c0_i32_0 : i32, i32
  }
  func.func @transform_4(%arg0: i32) -> (i32, i32) {
    %c0_i32 = arith.constant 0 : i32
    %c0_i32_0 = arith.constant 0 : i32
    %c0_i32_1 = arith.constant 0 : i32
    return %c0_i32, %c0_i32_0 : i32, i32
  }
  func.func @transform_5(%arg0: i32) -> (i32, i32) {
    %c0_i32 = arith.constant 0 : i32
    %c0_i32_0 = arith.constant 0 : i32
    %c0_i32_1 = arith.constant 0 : i32
    return %c0_i32, %c0_i32_0 : i32, i32
  }
  func.func @transform_6(%arg0: i32) -> (i32, i32) {
    %c0_i32 = arith.constant 0 : i32
    %c0_i32_0 = arith.constant 0 : i32
    %c0_i32_1 = arith.constant 0 : i32
    return %c0_i32, %c0_i32_0 : i32, i32
  }
  func.func @transform_7(%arg0: i32) -> (i32, i32) {
    %c0_i32 = arith.constant 0 : i32
    %c0_i32_0 = arith.constant 0 : i32
    %c0_i32_1 = arith.constant 0 : i32
    return %c0_i32, %c0_i32_0 : i32, i32
  }
  func.func @transform_8(%arg0: i32) -> (i32, i32) {
    %c0_i32 = arith.constant 0 : i32
    %c0_i32_0 = arith.constant 0 : i32
    %c0_i32_1 = arith.constant 0 : i32
    return %c0_i32, %c0_i32_0 : i32, i32
  }
  func.func @transform_9(%arg0: i32) -> (i32, i32) {
    %c0_i32 = arith.constant 0 : i32
    %c0_i32_0 = arith.constant 0 : i32
    %c0_i32_1 = arith.constant 0 : i32
    return %c0_i32, %c0_i32_0 : i32, i32
  }
  func.func @transform_10(%arg0: i32) -> (i32, i32) {
    %c0_i32 = arith.constant 0 : i32
    %c0_i32_0 = arith.constant 0 : i32
    return %arg0, %c0_i32 : i32, i32
  }
}

module attributes {stable_mosaic.version = 11 : i64} {
  func.func @_mlp_kernel(%arg0: i32, %arg1: memref<8x32xbf16, #tpu.memory_space<vmem>>, %arg2: memref<1x32xf32, #tpu.memory_space<vmem>>, %arg3: memref<32x128xbf16, #tpu.memory_space<vmem>>, %arg4: memref<1x128xf32, #tpu.memory_space<vmem>>, %arg5: memref<128x128xbf16, #tpu.memory_space<vmem>>, %arg6: memref<1x128xf32, #tpu.memory_space<vmem>>, %arg7: memref<128x128xbf16, #tpu.memory_space<vmem>>, %arg8: memref<1x128xf32, #tpu.memory_space<vmem>>, %arg9: memref<128x128xbf16, #tpu.memory_space<vmem>>, %arg10: memref<1x128xf32, #tpu.memory_space<vmem>>, %arg11: memref<8x128xf32, #tpu.memory_space<vmem>>) attributes {dimension_semantics = [#tpu.dimension_semantics<parallel>], iteration_bounds = array<i64: 1>, scalar_prefetch = 0 : i64, scratch_operands = 0 : i64, tpu.core_type = #tpu.core_type<tc>, window_params = [{transform_indices = @transform_0, window_bounds = array<i64: 8, 32>}, {pipeline_mode = #tpu.pipeline_mode<synchronous>, transform_indices = @transform_1, window_bounds = array<i64: 1, 32>}, {pipeline_mode = #tpu.pipeline_mode<synchronous>, transform_indices = @transform_2, window_bounds = array<i64: 32, 128>}, {pipeline_mode = #tpu.pipeline_mode<synchronous>, transform_indices = @transform_3, window_bounds = array<i64: 1, 128>}, {pipeline_mode = #tpu.pipeline_mode<synchronous>, transform_indices = @transform_4, window_bounds = array<i64: 128, 128>}, {pipeline_mode = #tpu.pipeline_mode<synchronous>, transform_indices = @transform_5, window_bounds = array<i64: 1, 128>}, {pipeline_mode = #tpu.pipeline_mode<synchronous>, transform_indices = @transform_6, window_bounds = array<i64: 128, 128>}, {pipeline_mode = #tpu.pipeline_mode<synchronous>, transform_indices = @transform_7, window_bounds = array<i64: 1, 128>}, {pipeline_mode = #tpu.pipeline_mode<synchronous>, transform_indices = @transform_8, window_bounds = array<i64: 128, 128>}, {pipeline_mode = #tpu.pipeline_mode<synchronous>, transform_indices = @transform_9, window_bounds = array<i64: 1, 128>}, {transform_indices = @transform_10, window_bounds = array<i64: 8, 128>}]} {
    %c0 = arith.constant 0 : index
    %c0_0 = arith.constant 0 : index
    %0 = vector.load %arg1[%c0, %c0_0] : memref<8x32xbf16, #tpu.memory_space<vmem>>, vector<8x32xbf16>
    %1 = arith.extf %0 : vector<8x32xbf16> to vector<8x32xf32>
    %c0_1 = arith.constant 0 : index
    %c0_2 = arith.constant 0 : index
    %2 = vector.load %arg2[%c0_1, %c0_2] : memref<1x32xf32, #tpu.memory_space<vmem>>, vector<1x32xf32>
    %3 = vector.broadcast %2 : vector<1x32xf32> to vector<8x32xf32>
    %4 = arith.addf %1, %3 : vector<8x32xf32>
    %cst = arith.constant 5.000000e-01 : f32
    %5 = vector.broadcast %cst : f32 to vector<8x32xf32>
    %6 = arith.mulf %5, %4 : vector<8x32xf32>
    %7 = math.tanh %6 : vector<8x32xf32>
    %cst_3 = arith.constant 5.000000e-01 : f32
    %8 = vector.broadcast %cst_3 : f32 to vector<8x32xf32>
    %9 = arith.mulf %8, %7 : vector<8x32xf32>
    %cst_4 = arith.constant 5.000000e-01 : f32
    %10 = vector.broadcast %cst_4 : f32 to vector<8x32xf32>
    %11 = arith.addf %9, %10 : vector<8x32xf32>
    %12 = arith.truncf %11 : vector<8x32xf32> to vector<8x32xbf16>
    %c0_5 = arith.constant 0 : index
    %c0_6 = arith.constant 0 : index
    %13 = vector.load %arg3[%c0_5, %c0_6] : memref<32x128xbf16, #tpu.memory_space<vmem>>, vector<32x128xbf16>
    %cst_7 = arith.constant dense<0.000000e+00> : vector<8x128xf32>
    %14 = tpu.matmul %12, %13, %cst_7 {dimension_numbers = #tpu.dot_dimension_numbers<[1], [0], [0], [1], [0, 0, 1, 1], [], []>} : vector<8x32xbf16>, vector<32x128xbf16>, vector<8x128xf32> -> vector<8x128xf32>
    %c0_8 = arith.constant 0 : index
    %c0_9 = arith.constant 0 : index
    %15 = vector.load %arg4[%c0_8, %c0_9] : memref<1x128xf32, #tpu.memory_space<vmem>>, vector<1x128xf32>
    %16 = vector.broadcast %15 : vector<1x128xf32> to vector<8x128xf32>
    %17 = arith.addf %14, %16 : vector<8x128xf32>
    %cst_10 = arith.constant 5.000000e-01 : f32
    %18 = vector.broadcast %cst_10 : f32 to vector<8x128xf32>
    %19 = arith.mulf %18, %17 : vector<8x128xf32>
    %20 = math.tanh %19 : vector<8x128xf32>
    %cst_11 = arith.constant 5.000000e-01 : f32
    %21 = vector.broadcast %cst_11 : f32 to vector<8x128xf32>
    %22 = arith.mulf %21, %20 : vector<8x128xf32>
    %cst_12 = arith.constant 5.000000e-01 : f32
    %23 = vector.broadcast %cst_12 : f32 to vector<8x128xf32>
    %24 = arith.addf %22, %23 : vector<8x128xf32>
    %25 = arith.truncf %24 : vector<8x128xf32> to vector<8x128xbf16>
    %c0_13 = arith.constant 0 : index
    %c0_14 = arith.constant 0 : index
    %26 = vector.load %arg5[%c0_13, %c0_14] : memref<128x128xbf16, #tpu.memory_space<vmem>>, vector<128x128xbf16>
    %cst_15 = arith.constant dense<0.000000e+00> : vector<8x128xf32>
    %27 = tpu.matmul %25, %26, %cst_15 {dimension_numbers = #tpu.dot_dimension_numbers<[1], [0], [0], [1], [0, 0, 1, 1], [], []>} : vector<8x128xbf16>, vector<128x128xbf16>, vector<8x128xf32> -> vector<8x128xf32>
    %c0_16 = arith.constant 0 : index
    %c0_17 = arith.constant 0 : index
    %28 = vector.load %arg6[%c0_16, %c0_17] : memref<1x128xf32, #tpu.memory_space<vmem>>, vector<1x128xf32>
    %29 = vector.broadcast %28 : vector<1x128xf32> to vector<8x128xf32>
    %30 = arith.addf %27, %29 : vector<8x128xf32>
    %cst_18 = arith.constant 5.000000e-01 : f32
    %31 = vector.broadcast %cst_18 : f32 to vector<8x128xf32>
    %32 = arith.mulf %31, %30 : vector<8x128xf32>
    %33 = math.tanh %32 : vector<8x128xf32>
    %cst_19 = arith.constant 5.000000e-01 : f32
    %34 = vector.broadcast %cst_19 : f32 to vector<8x128xf32>
    %35 = arith.mulf %34, %33 : vector<8x128xf32>
    %cst_20 = arith.constant 5.000000e-01 : f32
    %36 = vector.broadcast %cst_20 : f32 to vector<8x128xf32>
    %37 = arith.addf %35, %36 : vector<8x128xf32>
    %38 = arith.truncf %37 : vector<8x128xf32> to vector<8x128xbf16>
    %c0_21 = arith.constant 0 : index
    %c0_22 = arith.constant 0 : index
    %39 = vector.load %arg7[%c0_21, %c0_22] : memref<128x128xbf16, #tpu.memory_space<vmem>>, vector<128x128xbf16>
    %cst_23 = arith.constant dense<0.000000e+00> : vector<8x128xf32>
    %40 = tpu.matmul %38, %39, %cst_23 {dimension_numbers = #tpu.dot_dimension_numbers<[1], [0], [0], [1], [0, 0, 1, 1], [], []>} : vector<8x128xbf16>, vector<128x128xbf16>, vector<8x128xf32> -> vector<8x128xf32>
    %c0_24 = arith.constant 0 : index
    %c0_25 = arith.constant 0 : index
    %41 = vector.load %arg8[%c0_24, %c0_25] : memref<1x128xf32, #tpu.memory_space<vmem>>, vector<1x128xf32>
    %42 = vector.broadcast %41 : vector<1x128xf32> to vector<8x128xf32>
    %43 = arith.addf %40, %42 : vector<8x128xf32>
    %cst_26 = arith.constant 5.000000e-01 : f32
    %44 = vector.broadcast %cst_26 : f32 to vector<8x128xf32>
    %45 = arith.mulf %44, %43 : vector<8x128xf32>
    %46 = math.tanh %45 : vector<8x128xf32>
    %cst_27 = arith.constant 5.000000e-01 : f32
    %47 = vector.broadcast %cst_27 : f32 to vector<8x128xf32>
    %48 = arith.mulf %47, %46 : vector<8x128xf32>
    %cst_28 = arith.constant 5.000000e-01 : f32
    %49 = vector.broadcast %cst_28 : f32 to vector<8x128xf32>
    %50 = arith.addf %48, %49 : vector<8x128xf32>
    %51 = arith.truncf %50 : vector<8x128xf32> to vector<8x128xbf16>
    %c0_29 = arith.constant 0 : index
    %c0_30 = arith.constant 0 : index
    %52 = vector.load %arg9[%c0_29, %c0_30] : memref<128x128xbf16, #tpu.memory_space<vmem>>, vector<128x128xbf16>
    %cst_31 = arith.constant dense<0.000000e+00> : vector<8x128xf32>
    %53 = tpu.matmul %51, %52, %cst_31 {dimension_numbers = #tpu.dot_dimension_numbers<[1], [0], [0], [1], [0, 0, 1, 1], [], []>} : vector<8x128xbf16>, vector<128x128xbf16>, vector<8x128xf32> -> vector<8x128xf32>
    %c0_32 = arith.constant 0 : index
    %c0_33 = arith.constant 0 : index
    %54 = vector.load %arg10[%c0_32, %c0_33] : memref<1x128xf32, #tpu.memory_space<vmem>>, vector<1x128xf32>
    %55 = vector.broadcast %54 : vector<1x128xf32> to vector<8x128xf32>
    %56 = arith.addf %53, %55 : vector<8x128xf32>
    %57 = arith.negf %56 : vector<8x128xf32>
    %58 = math.exp %57 : vector<8x128xf32>
    %cst_34 = arith.constant 1.000000e+00 : f32
    %59 = vector.broadcast %cst_34 : f32 to vector<8x128xf32>
    %60 = arith.addf %59, %58 : vector<8x128xf32>
    %61 = arith.divf %59, %60 : vector<8x128xf32>
    %c0_35 = arith.constant 0 : index
    %c0_36 = arith.constant 0 : index
    %62 = vector.load %arg11[%c0_35, %c0_36] : memref<8x128xf32, #tpu.memory_space<vmem>>, vector<8x128xf32>
    tpu.vector_store %arg11[%c0_35, %c0_36], %61 {strides = array<i32>} : memref<8x128xf32, #tpu.memory_space<vmem>>, vector<8x128xf32>,
    return
  }
  func.func @transform_0(%arg0: i32) -> (i32, i32) {
    %c0_i32 = arith.constant 0 : i32
    %c0_i32_0 = arith.constant 0 : i32
    return %arg0, %c0_i32 : i32, i32
  }
  func.func @transform_1(%arg0: i32) -> (i32, i32) {
    %c0_i32 = arith.constant 0 : i32
    %c0_i32_0 = arith.constant 0 : i32
    %c0_i32_1 = arith.constant 0 : i32
    return %c0_i32, %c0_i32_0 : i32, i32
  }
  func.func @transform_2(%arg0: i32) -> (i32, i32) {
    %c0_i32 = arith.constant 0 : i32
    %c0_i32_0 = arith.constant 0 : i32
    %c0_i32_1 = arith.constant 0 : i32
    return %c0_i32, %c0_i32_0 : i32, i32
  }
  func.func @transform_3(%arg0: i32) -> (i32, i32) {
    %c0_i32 = arith.constant 0 : i32
    %c0_i32_0 = arith.constant 0 : i32
    %c0_i32_1 = arith.constant 0 : i32
    return %c0_i32, %c0_i32_0 : i32, i32
  }
  func.func @transform_4(%arg0: i32) -> (i32, i32) {
    %c0_i32 = arith.constant 0 : i32
    %c0_i32_0 = arith.constant 0 : i32
    %c0_i32_1 = arith.constant 0 : i32
    return %c0_i32, %c0_i32_0 : i32, i32
  }
  func.func @transform_5(%arg0: i32) -> (i32, i32) {
    %c0_i32 = arith.constant 0 : i32
    %c0_i32_0 = arith.constant 0 : i32
    %c0_i32_1 = arith.constant 0 : i32
    return %c0_i32, %c0_i32_0 : i32, i32
  }
  func.func @transform_6(%arg0: i32) -> (i32, i32) {
    %c0_i32 = arith.constant 0 : i32
    %c0_i32_0 = arith.constant 0 : i32
    %c0_i32_1 = arith.constant 0 : i32
    return %c0_i32, %c0_i32_0 : i32, i32
  }
  func.func @transform_7(%arg0: i32) -> (i32, i32) {
    %c0_i32 = arith.constant 0 : i32
    %c0_i32_0 = arith.constant 0 : i32
    %c0_i32_1 = arith.constant 0 : i32
    return %c0_i32, %c0_i32_0 : i32, i32
  }
  func.func @transform_8(%arg0: i32) -> (i32, i32) {
    %c0_i32 = arith.constant 0 : i32
    %c0_i32_0 = arith.constant 0 : i32
    %c0_i32_1 = arith.constant 0 : i32
    return %c0_i32, %c0_i32_0 : i32, i32
  }
  func.func @transform_9(%arg0: i32) -> (i32, i32) {
    %c0_i32 = arith.constant 0 : i32
    %c0_i32_0 = arith.constant 0 : i32
    %c0_i32_1 = arith.constant 0 : i32
    return %c0_i32, %c0_i32_0 : i32, i32
  }
  func.func @transform_10(%arg0: i32) -> (i32, i32) {
    %c0_i32 = arith.constant 0 : i32
    %c0_i32_0 = arith.constant 0 : i32
    return %arg0, %c0_i32 : i32, i32
  }
}

</mosaic_0001>

<llo_original>
// kernel: tpu_custom_call.1
$region0: #{tpu_custom_call.1}
  #allocation0 [shape = 'u32[]', space=smem, size = 0x4, offset = 0x4, fixed_abs, tag = 'smem constant byte address 0x4 - core index']
  #allocation1 [shape = 'u32[72,128]{1,0:T(1,128)}', space=vmem, size = 0x9000, scoped, tag = 'internal scratch']
  %s0 = inlined_call_operand.hbm [shape: bf16[8,32], index: 0, kind: input, shape index: {}]
  %s1 = inlined_call_operand.hbm [shape: f32[1,32], index: 1, kind: input, shape index: {}]
  %s2 = inlined_call_operand.hbm [shape: bf16[32,128], index: 2, kind: input, shape index: {}]
  %s3 = inlined_call_operand.vmem [shape: f32[1,128], index: 3, kind: input, shape index: {}]
  %s4 = inlined_call_operand.hbm [shape: bf16[128,128], index: 4, kind: input, shape index: {}]
  %s5 = inlined_call_operand.vmem [shape: f32[1,128], index: 5, kind: input, shape index: {}]
  %s6 = inlined_call_operand.hbm [shape: bf16[128,128], index: 6, kind: input, shape index: {}]
  %s7 = inlined_call_operand.vmem [shape: f32[1,128], index: 7, kind: input, shape index: {}]
  %s8 = inlined_call_operand.hbm [shape: bf16[128,128], index: 8, kind: input, shape index: {}]
  %s9 = inlined_call_operand.vmem [shape: f32[1,128], index: 9, kind: input, shape index: {}]
  %s10 = inlined_call_operand.hbm [shape: f32[8,128], index: 10, kind: output, shape index: {}]
  %s11 = sld [smem:[#allocation0]]
  $region74: #{tpu_custom_call.1} parent=0
    _
  %s13 = ssub.s32 1, %s11
  %s14 = scalar_select 0, %s13, %s11
  $region1: #{tpu_custom_call.1} parent=0
    #allocation2 [shape = 'u8[2048]{0}', space=vmem, size = 0x800, scoped, tag = 'input window, operand 0, single buffered']
    #allocation3 [shape = 's32[1]{0}', space=sflag, size = 0x4, scoped, tag = 'scoped memory for tpu_custom_call.1']
    #allocation4 [shape = 's32[1]{0}', space=sflag, size = 0x4, scoped, tag = 'scoped memory for tpu_custom_call.1']
    #allocation5 [shape = 'u8[512]{0}', space=vmem, size = 0x400, scoped, tag = 'input window, operand 1, single buffered']
    #allocation6 [shape = 's32[1]{0}', space=sflag, size = 0x4, scoped, tag = 'scoped memory for tpu_custom_call.1']
    #allocation7 [shape = 'u8[8192]{0}', space=vmem, size = 0x2000, scoped, tag = 'input window, operand 2, single buffered']
    #allocation8 [shape = 'u8[32768]{0}', space=vmem, size = 0x8000, scoped, tag = 'input window, operand 4, single buffered']
    #allocation9 [shape = 's32[1]{0}', space=sflag, size = 0x4, scoped, tag = 'scoped memory for tpu_custom_call.1']
    #allocation10 [shape = 'u8[32768]{0}', space=vmem, size = 0x8000, scoped, tag = 'input window, operand 6, single buffered']
    #allocation11 [shape = 'u8[32768]{0}', space=vmem, size = 0x8000, scoped, tag = 'input window, operand 8, single buffered']
    #allocation12 [shape = 's32[1]{0}', space=sflag, size = 0x4, scoped, tag = 'scoped memory for tpu_custom_call.1']
    #allocation13 [shape = 'u8[4096]{0}', space=vmem, size = 0x1000, scoped, tag = 'output window, operand 0, single buffered']
    %15 = vsyncpa [#allocation3], 0
    %16 = vsyncpa [#allocation6], 0
    %17 = vsyncpa [#allocation9], 0
    %18 = vsyncpa [#allocation12], 0
    %19 = vsyncpa [#allocation4], 0
    // Predicated region
    $region2: #{tpu_custom_call.1} parent=1 // pred_check
      _
    $region3: #{tpu_custom_call.1} parent=1 // pred_check_branch
      %21 = sbr.rel (0) target = $region5
    $region4: #{tpu_custom_call.1} parent=1 // pred_region
      %23 = vsyncadd [#allocation3], 0
      %s25 = sshll.u32 %s0, 4
      %s26 = int_to_ptr.hbm [resolvable:$true] %s25
      %s27 = sshll.u32 [#allocation2], 4
      %s28 = int_to_ptr.vmem [resolvable:$true] %s27
      %30 = dma.hbm_to_vmem [thread:$0]  %s26, 64, %s28, [#allocation3]
    $region5: #{tpu_custom_call.1} parent=1 // pred_fallthru
      _
    // Predicated region
    $region6: #{tpu_custom_call.1} parent=1 // pred_check
      _
    $region7: #{tpu_custom_call.1} parent=1 // pred_check_branch
      %32 = sbr.rel (0) target = $region9
    $region8: #{tpu_custom_call.1} parent=1 // pred_region
      %34 = vsyncadd [#allocation6], 0
      %s36 = sshll.u32 %s1, 4
      %s37 = int_to_ptr.hbm [resolvable:$true] %s36
      %s38 = sshll.u32 [#allocation5], 4
      %s39 = int_to_ptr.vmem [resolvable:$true] %s38
      %41 = dma.hbm_to_vmem [thread:$0]  %s37, 16, %s39, [#allocation6]
    $region9: #{tpu_custom_call.1} parent=1 // pred_fallthru
      _
    // Predicated region
    $region10: #{tpu_custom_call.1} parent=1 // pred_check
      _
    $region11: #{tpu_custom_call.1} parent=1 // pred_check_branch
      %43 = sbr.rel (0) target = $region13
    $region12: #{tpu_custom_call.1} parent=1 // pred_region
      %45 = vsyncadd [#allocation6], 0
      %s46 = sshll.u32 %s2, 4
      %s47 = int_to_ptr.hbm [resolvable:$true] %s46
      %s48 = sshll.u32 [#allocation7], 4
      %s49 = int_to_ptr.vmem [resolvable:$true] %s48
      %54 = dma.hbm_to_vmem [thread:$0]  %s47, 256, %s49, [#allocation6], 64, 64, 4
    $region13: #{tpu_custom_call.1} parent=1 // pred_fallthru
      _
    // Predicated region
    $region14: #{tpu_custom_call.1} parent=1 // pred_check
      _
    $region15: #{tpu_custom_call.1} parent=1 // pred_check_branch
      %56 = sbr.rel (0) target = $region17
    $region16: #{tpu_custom_call.1} parent=1 // pred_region
      _
    $region17: #{tpu_custom_call.1} parent=1 // pred_fallthru
      _
    // Predicated region
    $region18: #{tpu_custom_call.1} parent=1 // pred_check
      _
    $region19: #{tpu_custom_call.1} parent=1 // pred_check_branch
      %58 = sbr.rel (0) target = $region21
    $region20: #{tpu_custom_call.1} parent=1 // pred_region
      %60 = vsyncadd [#allocation9], 0
      %s61 = sshll.u32 %s4, 4
      %s62 = int_to_ptr.hbm [resolvable:$true] %s61
      %s63 = sshll.u32 [#allocation8], 4
      %s64 = int_to_ptr.vmem [resolvable:$true] %s63
      %69 = dma.hbm_to_vmem [thread:$0]  %s62, 1024, %s64, [#allocation9], 64, 64, 4
    $region21: #{tpu_custom_call.1} parent=1 // pred_fallthru
      _
    // Predicated region
    $region22: #{tpu_custom_call.1} parent=1 // pred_check
      _
    $region23: #{tpu_custom_call.1} parent=1 // pred_check_branch
      %71 = sbr.rel (0) target = $region25
    $region24: #{tpu_custom_call.1} parent=1 // pred_region
      _
    $region25: #{tpu_custom_call.1} parent=1 // pred_fallthru
      _
    // Predicated region
    $region26: #{tpu_custom_call.1} parent=1 // pred_check
      _
    $region27: #{tpu_custom_call.1} parent=1 // pred_check_branch
      %73 = sbr.rel (0) target = $region29
    $region28: #{tpu_custom_call.1} parent=1 // pred_region
      %75 = vsyncadd [#allocation9], 0
      %s76 = sshll.u32 %s6, 4
      %s77 = int_to_ptr.hbm [resolvable:$true] %s76
      %s78 = sshll.u32 [#allocation10], 4
      %s79 = int_to_ptr.vmem [resolvable:$true] %s78
      %84 = dma.hbm_to_vmem [thread:$0]  %s77, 1024, %s79, [#allocation9], 64, 64, 4
    $region29: #{tpu_custom_call.1} parent=1 // pred_fallthru
      _
    // Predicated region
    $region30: #{tpu_custom_call.1} parent=1 // pred_check
      _
    $region31: #{tpu_custom_call.1} parent=1 // pred_check_branch
      %86 = sbr.rel (0) target = $region33
    $region32: #{tpu_custom_call.1} parent=1 // pred_region
      _
    $region33: #{tpu_custom_call.1} parent=1 // pred_fallthru
      _
    // Predicated region
    $region34: #{tpu_custom_call.1} parent=1 // pred_check
      _
    $region35: #{tpu_custom_call.1} parent=1 // pred_check_branch
      %88 = sbr.rel (0) target = $region37
    $region36: #{tpu_custom_call.1} parent=1 // pred_region
      %90 = vsyncadd [#allocation12], 0
      %s91 = sshll.u32 %s8, 4
      %s92 = int_to_ptr.hbm [resolvable:$true] %s91
      %s93 = sshll.u32 [#allocation11], 4
      %s94 = int_to_ptr.vmem [resolvable:$true] %s93
      %99 = dma.hbm_to_vmem [thread:$0]  %s92, 1024, %s94, [#allocation12], 64, 64, 4
    $region37: #{tpu_custom_call.1} parent=1 // pred_fallthru
      _
    // Predicated region
    $region38: #{tpu_custom_call.1} parent=1 // pred_check
      _
    $region39: #{tpu_custom_call.1} parent=1 // pred_check_branch
      %101 = sbr.rel (0) target = $region41
    $region40: #{tpu_custom_call.1} parent=1 // pred_region
      _
    $region41: #{tpu_custom_call.1} parent=1 // pred_fallthru
      _
    // Predicated region
    $region42: #{tpu_custom_call.1} parent=1 // pred_check
      _
    $region43: #{tpu_custom_call.1} parent=1 // pred_check_branch
      %103 = sbr.rel (0) target = $region45
    $region44: #{tpu_custom_call.1} parent=1 // pred_region
      %105 = dma.done [#allocation3], 64
    $region45: #{tpu_custom_call.1} parent=1 // pred_fallthru
      _
    // Predicated region
    $region46: #{tpu_custom_call.1} parent=1 // pred_check
      _
    $region47: #{tpu_custom_call.1} parent=1 // pred_check_branch
      %107 = sbr.rel (0) target = $region49
    $region48: #{tpu_custom_call.1} parent=1 // pred_region
      %109 = dma.done [#allocation6], 16
    $region49: #{tpu_custom_call.1} parent=1 // pred_fallthru
      _
    // Predicated region
    $region50: #{tpu_custom_call.1} parent=1 // pred_check
      _
    $region51: #{tpu_custom_call.1} parent=1 // pred_check_branch
      %111 = sbr.rel (0) target = $region53
    $region52: #{tpu_custom_call.1} parent=1 // pred_region
      %113 = dma.done [#allocation6], 256
    $region53: #{tpu_custom_call.1} parent=1 // pred_fallthru
      _
    // Predicated region
    $region54: #{tpu_custom_call.1} parent=1 // pred_check
      _
    $region55: #{tpu_custom_call.1} parent=1 // pred_check_branch
      %115 = sbr.rel (0) target = $region57
    $region56: #{tpu_custom_call.1} parent=1 // pred_region
      %117 = dma.done [#allocation9], 1024
    $region57: #{tpu_custom_call.1} parent=1 // pred_fallthru
      _
    // Predicated region
    $region58: #{tpu_custom_call.1} parent=1 // pred_check
      _
    $region59: #{tpu_custom_call.1} parent=1 // pred_check_branch
      %119 = sbr.rel (0) target = $region61
    $region60: #{tpu_custom_call.1} parent=1 // pred_region
      %121 = dma.done [#allocation9], 1024
    $region61: #{tpu_custom_call.1} parent=1 // pred_fallthru
      _
    // Predicated region
    $region62: #{tpu_custom_call.1} parent=1 // pred_check
      _
    $region63: #{tpu_custom_call.1} parent=1 // pred_check_branch
      %123 = sbr.rel (0) target = $region65
    $region64: #{tpu_custom_call.1} parent=1 // pred_region
      %125 = dma.done [#allocation12], 1024
    $region65: #{tpu_custom_call.1} parent=1 // pred_fallthru
      _
    %v127 = vld [vmem:[#allocation2] sm:$0xf]
    %v128 = vunpack.c.l.bf16 %v127
    %v129 = vld [vmem:[#allocation5] sm:$0x1]
    %v131 = vperm.slane %v129, 0
    %v133 = vadd.f32 %v128, %v131
    %v134 = vmul.f32 %v133, 0.5
    %v135 = vtanh.pop %v134
    %v136 = vmul.f32 %v135, 0.5
    %v137 = vadd.f32 %v136, 0.5
    %v138 = vpack.c.bf16 %v137, %v137
    %v139 = vld [vmem:[#allocation7] sm:$0xf]
    %v140 = vld [vmem:[#allocation7 + $0x4] sm:$0xf]
    %v141 = vld [vmem:[#allocation7 + $0x8] sm:$0xf]
    %v142 = vld [vmem:[#allocation7 + $0xc] sm:$0xf]
    %v143 = vld [vmem:[%s3] sm:$0x1]
    %v145 = vperm.slane %v143, 0
    %v151 = vunpack.c.l.b16 %v139
    %v152 = vunpack.c.l.b16 %v140
    %v153 = vunpack.c.l.b16 %v141
    %v154 = vunpack.c.l.b16 %v142
    %v155 = vpack.c.b16 %v152, %v151
    %v156 = vpack.c.b16 %v154, %v153
    %vm159 = vcmask 261120
    %v161 = vsel %vm159, %v138, 0
    %163 = vmatpush.bf16.msra.mxu0 0
    %164 = vmatpush.bf16.msra.mxu0 0
    %165 = vmatpush.bf16.msra.mxu0 0
    %166 = vmatpush.bf16.msra.mxu0 0
    %167 = vmatpush.bf16.msra.mxu0 0
    %168 = vmatpush.bf16.msra.mxu0 0
    %169 = vmatpush.bf16.msra.mxu0 %v156
    %170 = vmatpush.bf16.msra.mxu0 %v155
    %171 = vmatmul.bf16.gmra.mxu0 %v161
    %v172 = vpop.f32.mrf.mxu0
    %v173 = vadd.f32 %v145, %v172
    %v174 = vpop.f32.mrf.mxu0
    %175 = vdwg.mxu0
    %v176 = vmul.f32 %v173, 0.5
    %v177 = vtanh.pop %v176
    %v178 = vmul.f32 %v177, 0.5
    %v179 = vadd.f32 %v178, 0.5
    %v180 = vpack.c.bf16 %v179, %v179
    %v181 = vld [vmem:[#allocation8] sm:$0xf]
    %v182 = vld [vmem:[#allocation8 + $0x4] sm:$0xf]
    %v183 = vld [vmem:[#allocation8 + $0x8] sm:$0xf]
    %v184 = vld [vmem:[#allocation8 + $0xc] sm:$0xf]
    %v185 = vld [vmem:[#allocation8 + $0x10] sm:$0xf]
    %v186 = vld [vmem:[#allocation8 + $0x14] sm:$0xf]
    %v187 = vld [vmem:[#allocation8 + $0x18] sm:$0xf]
    %v188 = vld [vmem:[#allocation8 + $0x1c] sm:$0xf]
    %v189 = vld [vmem:[#allocation8 + $0x20] sm:$0xf]
    %v190 = vld [vmem:[#allocation8 + $0x24] sm:$0xf]
    %v191 = vld [vmem:[#allocation8 + $0x28] sm:$0xf]
    %v192 = vld [vmem:[#allocation8 + $0x2c] sm:$0xf]
    %v193 = vld [vmem:[#allocation8 + $0x30] sm:$0xf]
    %v194 = vld [vmem:[#allocation8 + $0x34] sm:$0xf]
    %v195 = vld [vmem:[#allocation8 + $0x38] sm:$0xf]
    %v196 = vld [vmem:[#allocation8 + $0x3c] sm:$0xf]
    %v197 = vld [vmem:[%s5] sm:$0x1]
    %v199 = vperm.slane %v197, 0
    %v217 = vunpack.c.l.b16 %v181
    %v218 = vunpack.c.l.b16 %v182
    %v219 = vunpack.c.l.b16 %v183
    %v220 = vunpack.c.l.b16 %v184
    %v221 = vunpack.c.l.b16 %v185
    %v222 = vunpack.c.l.b16 %v186
    %v223 = vunpack.c.l.b16 %v187
    %v224 = vunpack.c.l.b16 %v188
    %v225 = vunpack.c.l.b16 %v189
    %v226 = vunpack.c.l.b16 %v190
    %v227 = vunpack.c.l.b16 %v191
    %v228 = vunpack.c.l.b16 %v192
    %v229 = vunpack.c.l.b16 %v193
    %v230 = vunpack.c.l.b16 %v194
    %v231 = vunpack.c.l.b16 %v195
    %v232 = vunpack.c.l.b16 %v196
    %v233 = vpack.c.b16 %v218, %v217
    %v234 = vpack.c.b16 %v220, %v219
    %v235 = vpack.c.b16 %v222, %v221
    %v236 = vpack.c.b16 %v224, %v223
    %v237 = vpack.c.b16 %v226, %v225
    %v238 = vpack.c.b16 %v228, %v227
    %v239 = vpack.c.b16 %v230, %v229
    %v240 = vpack.c.b16 %v232, %v231
    %249 = vmatpush.bf16.msra.mxu0 %v240
    %250 = vmatpush.bf16.msra.mxu0 %v239
    %251 = vmatpush.bf16.msra.mxu0 %v238
    %252 = vmatpush.bf16.msra.mxu0 %v237
    %253 = vmatpush.bf16.msra.mxu0 %v236
    %254 = vmatpush.bf16.msra.mxu0 %v235
    %255 = vmatpush.bf16.msra.mxu0 %v234
    %256 = vmatpush.bf16.msra.mxu0 %v233
    %257 = vmatmul.bf16.gmra.mxu0 %v180
    %v258 = vpop.f32.mrf.mxu0
    %v259 = vadd.f32 %v199, %v258
    %v260 = vpop.f32.mrf.mxu0
    %261 = vdwg.mxu0
    %v262 = vmul.f32 %v259, 0.5
    %v263 = vtanh.pop %v262
    %v264 = vmul.f32 %v263, 0.5
    %v265 = vadd.f32 %v264, 0.5
    %v266 = vpack.c.bf16 %v265, %v265
    %v267 = vld [vmem:[#allocation10] sm:$0xf]
    %v268 = vld [vmem:[#allocation10 + $0x4] sm:$0xf]
    %v269 = vld [vmem:[#allocation10 + $0x8] sm:$0xf]
    %v270 = vld [vmem:[#allocation10 + $0xc] sm:$0xf]
    %v271 = vld [vmem:[#allocation10 + $0x10] sm:$0xf]
    %v272 = vld [vmem:[#allocation10 + $0x14] sm:$0xf]
    %v273 = vld [vmem:[#allocation10 + $0x18] sm:$0xf]
    %v274 = vld [vmem:[#allocation10 + $0x1c] sm:$0xf]
    %v275 = vld [vmem:[#allocation10 + $0x20] sm:$0xf]
    %v276 = vld [vmem:[#allocation10 + $0x24] sm:$0xf]
    %v277 = vld [vmem:[#allocation10 + $0x28] sm:$0xf]
    %v278 = vld [vmem:[#allocation10 + $0x2c] sm:$0xf]
    %v279 = vld [vmem:[#allocation10 + $0x30] sm:$0xf]
    %v280 = vld [vmem:[#allocation10 + $0x34] sm:$0xf]
    %v281 = vld [vmem:[#allocation10 + $0x38] sm:$0xf]
    %v282 = vld [vmem:[#allocation10 + $0x3c] sm:$0xf]
    %v283 = vld [vmem:[%s7] sm:$0x1]
    %v285 = vperm.slane %v283, 0
    %v303 = vunpack.c.l.b16 %v267
    %v304 = vunpack.c.l.b16 %v268
    %v305 = vunpack.c.l.b16 %v269
    %v306 = vunpack.c.l.b16 %v270
    %v307 = vunpack.c.l.b16 %v271
    %v308 = vunpack.c.l.b16 %v272
    %v309 = vunpack.c.l.b16 %v273
    %v310 = vunpack.c.l.b16 %v274
    %v311 = vunpack.c.l.b16 %v275
    %v312 = vunpack.c.l.b16 %v276
    %v313 = vunpack.c.l.b16 %v277
    %v314 = vunpack.c.l.b16 %v278
    %v315 = vunpack.c.l.b16 %v279
    %v316 = vunpack.c.l.b16 %v280
    %v317 = vunpack.c.l.b16 %v281
    %v318 = vunpack.c.l.b16 %v282
    %v319 = vpack.c.b16 %v304, %v303
    %v320 = vpack.c.b16 %v306, %v305
    %v321 = vpack.c.b16 %v308, %v307
    %v322 = vpack.c.b16 %v310, %v309
    %v323 = vpack.c.b16 %v312, %v311
    %v324 = vpack.c.b16 %v314, %v313
    %v325 = vpack.c.b16 %v316, %v315
    %v326 = vpack.c.b16 %v318, %v317
    %335 = vmatpush.bf16.msra.mxu0 %v326
    %336 = vmatpush.bf16.msra.mxu0 %v325
    %337 = vmatpush.bf16.msra.mxu0 %v324
    %338 = vmatpush.bf16.msra.mxu0 %v323
    %339 = vmatpush.bf16.msra.mxu0 %v322
    %340 = vmatpush.bf16.msra.mxu0 %v321
    %341 = vmatpush.bf16.msra.mxu0 %v320
    %342 = vmatpush.bf16.msra.mxu0 %v319
    %343 = vmatmul.bf16.gmra.mxu0 %v266
    %v344 = vpop.f32.mrf.mxu0
    %v345 = vadd.f32 %v285, %v344
    %v346 = vpop.f32.mrf.mxu0
    %347 = vdwg.mxu0
    %v348 = vmul.f32 %v345, 0.5
    %v349 = vtanh.pop %v348
    %v350 = vmul.f32 %v349, 0.5
    %v351 = vadd.f32 %v350, 0.5
    %v352 = vpack.c.bf16 %v351, %v351
    %v353 = vld [vmem:[#allocation11] sm:$0xf]
    %v354 = vld [vmem:[#allocation11 + $0x4] sm:$0xf]
    %v355 = vld [vmem:[#allocation11 + $0x8] sm:$0xf]
    %v356 = vld [vmem:[#allocation11 + $0xc] sm:$0xf]
    %v357 = vld [vmem:[#allocation11 + $0x10] sm:$0xf]
    %v358 = vld [vmem:[#allocation11 + $0x14] sm:$0xf]
    %v359 = vld [vmem:[#allocation11 + $0x18] sm:$0xf]
    %v360 = vld [vmem:[#allocation11 + $0x1c] sm:$0xf]
    %v361 = vld [vmem:[#allocation11 + $0x20] sm:$0xf]
    %v362 = vld [vmem:[#allocation11 + $0x24] sm:$0xf]
    %v363 = vld [vmem:[#allocation11 + $0x28] sm:$0xf]
    %v364 = vld [vmem:[#allocation11 + $0x2c] sm:$0xf]
    %v365 = vld [vmem:[#allocation11 + $0x30] sm:$0xf]
    %v366 = vld [vmem:[#allocation11 + $0x34] sm:$0xf]
    %v367 = vld [vmem:[#allocation11 + $0x38] sm:$0xf]
    %v368 = vld [vmem:[#allocation11 + $0x3c] sm:$0xf]
    %v369 = vld [vmem:[%s9] sm:$0x1]
    %v371 = vperm.slane %v369, 0
    %v389 = vunpack.c.l.b16 %v353
    %v390 = vunpack.c.l.b16 %v354
    %v391 = vunpack.c.l.b16 %v355
    %v392 = vunpack.c.l.b16 %v356
    %v393 = vunpack.c.l.b16 %v357
    %v394 = vunpack.c.l.b16 %v358
    %v395 = vunpack.c.l.b16 %v359
    %v396 = vunpack.c.l.b16 %v360
    %v397 = vunpack.c.l.b16 %v361
    %v398 = vunpack.c.l.b16 %v362
    %v399 = vunpack.c.l.b16 %v363
    %v400 = vunpack.c.l.b16 %v364
    %v401 = vunpack.c.l.b16 %v365
    %v402 = vunpack.c.l.b16 %v366
    %v403 = vunpack.c.l.b16 %v367
    %v404 = vunpack.c.l.b16 %v368
    %v405 = vpack.c.b16 %v390, %v389
    %v406 = vpack.c.b16 %v392, %v391
    %v407 = vpack.c.b16 %v394, %v393
    %v408 = vpack.c.b16 %v396, %v395
    %v409 = vpack.c.b16 %v398, %v397
    %v410 = vpack.c.b16 %v400, %v399
    %v411 = vpack.c.b16 %v402, %v401
    %v412 = vpack.c.b16 %v404, %v403
    %421 = vmatpush.bf16.msra.mxu0 %v412
    %422 = vmatpush.bf16.msra.mxu0 %v411
    %423 = vmatpush.bf16.msra.mxu0 %v410
    %424 = vmatpush.bf16.msra.mxu0 %v409
    %425 = vmatpush.bf16.msra.mxu0 %v408
    %426 = vmatpush.bf16.msra.mxu0 %v407
    %427 = vmatpush.bf16.msra.mxu0 %v406
    %428 = vmatpush.bf16.msra.mxu0 %v405
    %429 = vmatmul.bf16.gmra.mxu0 %v352
    %v430 = vpop.f32.mrf.mxu0
    %v431 = vadd.f32 %v371, %v430
    %v432 = vpop.f32.mrf.mxu0
    %433 = vdwg.mxu0
    %v434 = vxor.u32 %v431, 2147483648
    %v435 = vmul.f32 %v434, 1.442695
    %v436 = vpow.pop %v435
    %v437 = vadd.f32 %v436, 1.0
    %v438 = vrcp.pop %v437
    %v439 = vmul.f32 %v437, %v438
    %v440 = vsub.f32 1.0, %v439
    %v441 = vmul.f32 %v438, %v440
    %v442 = vadd.f32 %v438, %v441
    %vm443 = vweird.f32 %v437
    %vm444 = vweird.f32 %v438
    %vm445 = vmor %vm443, %vm444
    %v446 = vsel %vm445, %v438, %v442
    %v447 = vand.u32 2147483647, %v437
    %vm448 = vcmp.eq.f32.partialorder %v447, 8.507059e+37
    %v449 = vand.u32 %v437, 2147483648
    %v450 = vor.u32 1.1754944e-38, %v449
    %v451 = vsel %vm448, %v450, %v446
    %v452 = vmul.f32 1.0, %v451
    %453 = vst [vmem:[#allocation13] sm:$0xff] %v452
    // Predicated region
    $region66: #{tpu_custom_call.1} parent=1 // pred_check
      _
    $region67: #{tpu_custom_call.1} parent=1 // pred_check_branch
      %455 = sbr.rel (0) target = $region69
    $region68: #{tpu_custom_call.1} parent=1 // pred_region
      %457 = vsyncadd [#allocation4], 0
      %s459 = sshll.u32 [#allocation13], 4
      %s460 = int_to_ptr.vmem [resolvable:$true] %s459
      %s461 = sshll.u32 %s10, 4
      %s462 = int_to_ptr.hbm [resolvable:$true] %s461
      %464 = dma.vmem_to_hbm [thread:$0]  %s460, 128, %s462, [#allocation4]
    $region69: #{tpu_custom_call.1} parent=1 // pred_fallthru
      _
    // Predicated region
    $region70: #{tpu_custom_call.1} parent=1 // pred_check
      _
    $region71: #{tpu_custom_call.1} parent=1 // pred_check_branch
      %466 = sbr.rel (0) target = $region73
    $region72: #{tpu_custom_call.1} parent=1 // pred_region
      %468 = dma.done [#allocation4], 128
    $region73: #{tpu_custom_call.1} parent=1 // pred_fallthru
      _
    %469 = vsyncpa [#allocation3], 1
    %470 = vsyncpa [#allocation6], 1
    %471 = vsyncpa [#allocation9], 1
    %472 = vsyncpa [#allocation12], 1
    %473 = vsyncpa [#allocation4], 1

// kernel: tpu_custom_call.1
$region0: #{tpu_custom_call.1}
  #allocation0 [shape = 'u32[]', space=smem, size = 0x4, offset = 0x4, fixed_abs, tag = 'smem constant byte address 0x4 - core index']
  #allocation1 [shape = 'u32[72,128]{1,0:T(1,128)}', space=vmem, size = 0x9000, scoped, tag = 'internal scratch']
  %s0 = inlined_call_operand.hbm [shape: bf16[8,32], index: 0, kind: input, shape index: {}]
  %s1 = inlined_call_operand.hbm [shape: f32[1,32], index: 1, kind: input, shape index: {}]
  %s2 = inlined_call_operand.hbm [shape: bf16[32,128], index: 2, kind: input, shape index: {}]
  %s3 = inlined_call_operand.vmem [shape: f32[1,128], index: 3, kind: input, shape index: {}]
  %s4 = inlined_call_operand.hbm [shape: bf16[128,128], index: 4, kind: input, shape index: {}]
  %s5 = inlined_call_operand.vmem [shape: f32[1,128], index: 5, kind: input, shape index: {}]
  %s6 = inlined_call_operand.hbm [shape: bf16[128,128], index: 6, kind: input, shape index: {}]
  %s7 = inlined_call_operand.vmem [shape: f32[1,128], index: 7, kind: input, shape index: {}]
  %s8 = inlined_call_operand.hbm [shape: bf16[128,128], index: 8, kind: input, shape index: {}]
  %s9 = inlined_call_operand.vmem [shape: f32[1,128], index: 9, kind: input, shape index: {}]
  %s10 = inlined_call_operand.hbm [shape: f32[8,128], index: 10, kind: output, shape index: {}]
  %s11 = sld [smem:[#allocation0]]
  $region74: #{tpu_custom_call.1} parent=0
    _
  %s13 = ssub.s32 1, %s11
  %s14 = scalar_select 0, %s13, %s11
  $region1: #{tpu_custom_call.1} parent=0
    #allocation2 [shape = 'u8[2048]{0}', space=vmem, size = 0x800, scoped, tag = 'input window, operand 0, single buffered']
    #allocation3 [shape = 's32[1]{0}', space=sflag, size = 0x4, scoped, tag = 'scoped memory for tpu_custom_call.1']
    #allocation4 [shape = 's32[1]{0}', space=sflag, size = 0x4, scoped, tag = 'scoped memory for tpu_custom_call.1']
    #allocation5 [shape = 'u8[512]{0}', space=vmem, size = 0x400, scoped, tag = 'input window, operand 1, single buffered']
    #allocation6 [shape = 's32[1]{0}', space=sflag, size = 0x4, scoped, tag = 'scoped memory for tpu_custom_call.1']
    #allocation7 [shape = 'u8[8192]{0}', space=vmem, size = 0x2000, scoped, tag = 'input window, operand 2, single buffered']
    #allocation8 [shape = 'u8[32768]{0}', space=vmem, size = 0x8000, scoped, tag = 'input window, operand 4, single buffered']
    #allocation9 [shape = 's32[1]{0}', space=sflag, size = 0x4, scoped, tag = 'scoped memory for tpu_custom_call.1']
    #allocation10 [shape = 'u8[32768]{0}', space=vmem, size = 0x8000, scoped, tag = 'input window, operand 6, single buffered']
    #allocation11 [shape = 'u8[32768]{0}', space=vmem, size = 0x8000, scoped, tag = 'input window, operand 8, single buffered']
    #allocation12 [shape = 's32[1]{0}', space=sflag, size = 0x4, scoped, tag = 'scoped memory for tpu_custom_call.1']
    #allocation13 [shape = 'u8[4096]{0}', space=vmem, size = 0x1000, scoped, tag = 'output window, operand 0, single buffered']
    %15 = vsyncpa [#allocation3], 0
    %16 = vsyncpa [#allocation6], 0
    %17 = vsyncpa [#allocation9], 0
    %18 = vsyncpa [#allocation12], 0
    %19 = vsyncpa [#allocation4], 0
    // Predicated region
    $region2: #{tpu_custom_call.1} parent=1 // pred_check
      _
    $region3: #{tpu_custom_call.1} parent=1 // pred_check_branch
      %21 = sbr.rel (0) target = $region5
    $region4: #{tpu_custom_call.1} parent=1 // pred_region
      %23 = vsyncadd [#allocation3], 0
      %s25 = sshll.u32 %s0, 4
      %s26 = int_to_ptr.hbm [resolvable:$true] %s25
      %s27 = sshll.u32 [#allocation2], 4
      %s28 = int_to_ptr.vmem [resolvable:$true] %s27
      %30 = dma.hbm_to_vmem [thread:$0]  %s26, 64, %s28, [#allocation3]
    $region5: #{tpu_custom_call.1} parent=1 // pred_fallthru
      _
    // Predicated region
    $region6: #{tpu_custom_call.1} parent=1 // pred_check
      _
    $region7: #{tpu_custom_call.1} parent=1 // pred_check_branch
      %32 = sbr.rel (0) target = $region9
    $region8: #{tpu_custom_call.1} parent=1 // pred_region
      %34 = vsyncadd [#allocation6], 0
      %s36 = sshll.u32 %s1, 4
      %s37 = int_to_ptr.hbm [resolvable:$true] %s36
      %s38 = sshll.u32 [#allocation5], 4
      %s39 = int_to_ptr.vmem [resolvable:$true] %s38
      %41 = dma.hbm_to_vmem [thread:$0]  %s37, 16, %s39, [#allocation6]
    $region9: #{tpu_custom_call.1} parent=1 // pred_fallthru
      _
    // Predicated region
    $region10: #{tpu_custom_call.1} parent=1 // pred_check
      _
    $region11: #{tpu_custom_call.1} parent=1 // pred_check_branch
      %43 = sbr.rel (0) target = $region13
    $region12: #{tpu_custom_call.1} parent=1 // pred_region
      %45 = vsyncadd [#allocation6], 0
      %s46 = sshll.u32 %s2, 4
      %s47 = int_to_ptr.hbm [resolvable:$true] %s46
      %s48 = sshll.u32 [#allocation7], 4
      %s49 = int_to_ptr.vmem [resolvable:$true] %s48
      %54 = dma.hbm_to_vmem [thread:$0]  %s47, 256, %s49, [#allocation6], 64, 64, 4
    $region13: #{tpu_custom_call.1} parent=1 // pred_fallthru
      _
    // Predicated region
    $region14: #{tpu_custom_call.1} parent=1 // pred_check
      _
    $region15: #{tpu_custom_call.1} parent=1 // pred_check_branch
      %56 = sbr.rel (0) target = $region17
    $region16: #{tpu_custom_call.1} parent=1 // pred_region
      _
    $region17: #{tpu_custom_call.1} parent=1 // pred_fallthru
      _
    // Predicated region
    $region18: #{tpu_custom_call.1} parent=1 // pred_check
      _
    $region19: #{tpu_custom_call.1} parent=1 // pred_check_branch
      %58 = sbr.rel (0) target = $region21
    $region20: #{tpu_custom_call.1} parent=1 // pred_region
      %60 = vsyncadd [#allocation9], 0
      %s61 = sshll.u32 %s4, 4
      %s62 = int_to_ptr.hbm [resolvable:$true] %s61
      %s63 = sshll.u32 [#allocation8], 4
      %s64 = int_to_ptr.vmem [resolvable:$true] %s63
      %69 = dma.hbm_to_vmem [thread:$0]  %s62, 1024, %s64, [#allocation9], 64, 64, 4
    $region21: #{tpu_custom_call.1} parent=1 // pred_fallthru
      _
    // Predicated region
    $region22: #{tpu_custom_call.1} parent=1 // pred_check
      _
    $region23: #{tpu_custom_call.1} parent=1 // pred_check_branch
      %71 = sbr.rel (0) target = $region25
    $region24: #{tpu_custom_call.1} parent=1 // pred_region
      _
    $region25: #{tpu_custom_call.1} parent=1 // pred_fallthru
      _
    // Predicated region
    $region26: #{tpu_custom_call.1} parent=1 // pred_check
      _
    $region27: #{tpu_custom_call.1} parent=1 // pred_check_branch
      %73 = sbr.rel (0) target = $region29
    $region28: #{tpu_custom_call.1} parent=1 // pred_region
      %75 = vsyncadd [#allocation9], 0
      %s76 = sshll.u32 %s6, 4
      %s77 = int_to_ptr.hbm [resolvable:$true] %s76
      %s78 = sshll.u32 [#allocation10], 4
      %s79 = int_to_ptr.vmem [resolvable:$true] %s78
      %84 = dma.hbm_to_vmem [thread:$0]  %s77, 1024, %s79, [#allocation9], 64, 64, 4
    $region29: #{tpu_custom_call.1} parent=1 // pred_fallthru
      _
    // Predicated region
    $region30: #{tpu_custom_call.1} parent=1 // pred_check
      _
    $region31: #{tpu_custom_call.1} parent=1 // pred_check_branch
      %86 = sbr.rel (0) target = $region33
    $region32: #{tpu_custom_call.1} parent=1 // pred_region
      _
    $region33: #{tpu_custom_call.1} parent=1 // pred_fallthru
      _
    // Predicated region
    $region34: #{tpu_custom_call.1} parent=1 // pred_check
      _
    $region35: #{tpu_custom_call.1} parent=1 // pred_check_branch
      %88 = sbr.rel (0) target = $region37
    $region36: #{tpu_custom_call.1} parent=1 // pred_region
      %90 = vsyncadd [#allocation12], 0
      %s91 = sshll.u32 %s8, 4
      %s92 = int_to_ptr.hbm [resolvable:$true] %s91
      %s93 = sshll.u32 [#allocation11], 4
      %s94 = int_to_ptr.vmem [resolvable:$true] %s93
      %99 = dma.hbm_to_vmem [thread:$0]  %s92, 1024, %s94, [#allocation12], 64, 64, 4
    $region37: #{tpu_custom_call.1} parent=1 // pred_fallthru
      _
    // Predicated region
    $region38: #{tpu_custom_call.1} parent=1 // pred_check
      _
    $region39: #{tpu_custom_call.1} parent=1 // pred_check_branch
      %101 = sbr.rel (0) target = $region41
    $region40: #{tpu_custom_call.1} parent=1 // pred_region
      _
    $region41: #{tpu_custom_call.1} parent=1 // pred_fallthru
      _
    // Predicated region
    $region42: #{tpu_custom_call.1} parent=1 // pred_check
      _
    $region43: #{tpu_custom_call.1} parent=1 // pred_check_branch
      %103 = sbr.rel (0) target = $region45
    $region44: #{tpu_custom_call.1} parent=1 // pred_region
      %105 = dma.done [#allocation3], 64
    $region45: #{tpu_custom_call.1} parent=1 // pred_fallthru
      _
    // Predicated region
    $region46: #{tpu_custom_call.1} parent=1 // pred_check
      _
    $region47: #{tpu_custom_call.1} parent=1 // pred_check_branch
      %107 = sbr.rel (0) target = $region49
    $region48: #{tpu_custom_call.1} parent=1 // pred_region
      %109 = dma.done [#allocation6], 16
    $region49: #{tpu_custom_call.1} parent=1 // pred_fallthru
      _
    // Predicated region
    $region50: #{tpu_custom_call.1} parent=1 // pred_check
      _
    $region51: #{tpu_custom_call.1} parent=1 // pred_check_branch
      %111 = sbr.rel (0) target = $region53
    $region52: #{tpu_custom_call.1} parent=1 // pred_region
      %113 = dma.done [#allocation6], 256
    $region53: #{tpu_custom_call.1} parent=1 // pred_fallthru
      _
    // Predicated region
    $region54: #{tpu_custom_call.1} parent=1 // pred_check
      _
    $region55: #{tpu_custom_call.1} parent=1 // pred_check_branch
      %115 = sbr.rel (0) target = $region57
    $region56: #{tpu_custom_call.1} parent=1 // pred_region
      %117 = dma.done [#allocation9], 1024
    $region57: #{tpu_custom_call.1} parent=1 // pred_fallthru
      _
    // Predicated region
    $region58: #{tpu_custom_call.1} parent=1 // pred_check
      _
    $region59: #{tpu_custom_call.1} parent=1 // pred_check_branch
      %119 = sbr.rel (0) target = $region61
    $region60: #{tpu_custom_call.1} parent=1 // pred_region
      %121 = dma.done [#allocation9], 1024
    $region61: #{tpu_custom_call.1} parent=1 // pred_fallthru
      _
    // Predicated region
    $region62: #{tpu_custom_call.1} parent=1 // pred_check
      _
    $region63: #{tpu_custom_call.1} parent=1 // pred_check_branch
      %123 = sbr.rel (0) target = $region65
    $region64: #{tpu_custom_call.1} parent=1 // pred_region
      %125 = dma.done [#allocation12], 1024
    $region65: #{tpu_custom_call.1} parent=1 // pred_fallthru
      _
    %v127 = vld [vmem:[#allocation2] sm:$0xf]
    %v128 = vunpack.c.l.bf16 %v127
    %v129 = vld [vmem:[#allocation5] sm:$0x1]
    %v131 = vperm.slane %v129, 0
    %v133 = vadd.f32 %v128, %v131
    %v134 = vmul.f32 %v133, 0.5
    %v135 = vtanh.pop %v134
    %v136 = vmul.f32 %v135, 0.5
    %v137 = vadd.f32 %v136, 0.5
    %v138 = vpack.c.bf16 %v137, %v137
    %v139 = vld [vmem:[#allocation7] sm:$0xf]
    %v140 = vld [vmem:[#allocation7 + $0x4] sm:$0xf]
    %v141 = vld [vmem:[#allocation7 + $0x8] sm:$0xf]
    %v142 = vld [vmem:[#allocation7 + $0xc] sm:$0xf]
    %v143 = vld [vmem:[%s3] sm:$0x1]
    %v145 = vperm.slane %v143, 0
    %v151 = vunpack.c.l.b16 %v139
    %v152 = vunpack.c.l.b16 %v140
    %v153 = vunpack.c.l.b16 %v141
    %v154 = vunpack.c.l.b16 %v142
    %v155 = vpack.c.b16 %v152, %v151
    %v156 = vpack.c.b16 %v154, %v153
    %vm159 = vcmask 261120
    %v161 = vsel %vm159, %v138, 0
    %163 = vmatpush.bf16.msra.mxu0 0
    %164 = vmatpush.bf16.msra.mxu0 0
    %165 = vmatpush.bf16.msra.mxu0 0
    %166 = vmatpush.bf16.msra.mxu0 0
    %167 = vmatpush.bf16.msra.mxu0 0
    %168 = vmatpush.bf16.msra.mxu0 0
    %169 = vmatpush.bf16.msra.mxu0 %v156
    %170 = vmatpush.bf16.msra.mxu0 %v155
    %171 = vmatmul.bf16.gmra.mxu0 %v161
    %v172 = vpop.f32.mrf.mxu0
    %v173 = vadd.f32 %v145, %v172
    %v174 = vpop.f32.mrf.mxu0
    %175 = vdwg.mxu0
    %v176 = vmul.f32 %v173, 0.5
    %v177 = vtanh.pop %v176
    %v178 = vmul.f32 %v177, 0.5
    %v179 = vadd.f32 %v178, 0.5
    %v180 = vpack.c.bf16 %v179, %v179
    %v181 = vld [vmem:[#allocation8] sm:$0xf]
    %v182 = vld [vmem:[#allocation8 + $0x4] sm:$0xf]
    %v183 = vld [vmem:[#allocation8 + $0x8] sm:$0xf]
    %v184 = vld [vmem:[#allocation8 + $0xc] sm:$0xf]
    %v185 = vld [vmem:[#allocation8 + $0x10] sm:$0xf]
    %v186 = vld [vmem:[#allocation8 + $0x14] sm:$0xf]
    %v187 = vld [vmem:[#allocation8 + $0x18] sm:$0xf]
    %v188 = vld [vmem:[#allocation8 + $0x1c] sm:$0xf]
    %v189 = vld [vmem:[#allocation8 + $0x20] sm:$0xf]
    %v190 = vld [vmem:[#allocation8 + $0x24] sm:$0xf]
    %v191 = vld [vmem:[#allocation8 + $0x28] sm:$0xf]
    %v192 = vld [vmem:[#allocation8 + $0x2c] sm:$0xf]
    %v193 = vld [vmem:[#allocation8 + $0x30] sm:$0xf]
    %v194 = vld [vmem:[#allocation8 + $0x34] sm:$0xf]
    %v195 = vld [vmem:[#allocation8 + $0x38] sm:$0xf]
    %v196 = vld [vmem:[#allocation8 + $0x3c] sm:$0xf]
    %v197 = vld [vmem:[%s5] sm:$0x1]
    %v199 = vperm.slane %v197, 0
    %v217 = vunpack.c.l.b16 %v181
    %v218 = vunpack.c.l.b16 %v182
    %v219 = vunpack.c.l.b16 %v183
    %v220 = vunpack.c.l.b16 %v184
    %v221 = vunpack.c.l.b16 %v185
    %v222 = vunpack.c.l.b16 %v186
    %v223 = vunpack.c.l.b16 %v187
    %v224 = vunpack.c.l.b16 %v188
    %v225 = vunpack.c.l.b16 %v189
    %v226 = vunpack.c.l.b16 %v190
    %v227 = vunpack.c.l.b16 %v191
    %v228 = vunpack.c.l.b16 %v192
    %v229 = vunpack.c.l.b16 %v193
    %v230 = vunpack.c.l.b16 %v194
    %v231 = vunpack.c.l.b16 %v195
    %v232 = vunpack.c.l.b16 %v196
    %v233 = vpack.c.b16 %v218, %v217
    %v234 = vpack.c.b16 %v220, %v219
    %v235 = vpack.c.b16 %v222, %v221
    %v236 = vpack.c.b16 %v224, %v223
    %v237 = vpack.c.b16 %v226, %v225
    %v238 = vpack.c.b16 %v228, %v227
    %v239 = vpack.c.b16 %v230, %v229
    %v240 = vpack.c.b16 %v232, %v231
    %249 = vmatpush.bf16.msra.mxu0 %v240
    %250 = vmatpush.bf16.msra.mxu0 %v239
    %251 = vmatpush.bf16.msra.mxu0 %v238
    %252 = vmatpush.bf16.msra.mxu0 %v237
    %253 = vmatpush.bf16.msra.mxu0 %v236
    %254 = vmatpush.bf16.msra.mxu0 %v235
    %255 = vmatpush.bf16.msra.mxu0 %v234
    %256 = vmatpush.bf16.msra.mxu0 %v233
    %257 = vmatmul.bf16.gmra.mxu0 %v180
    %v258 = vpop.f32.mrf.mxu0
    %v259 = vadd.f32 %v199, %v258
    %v260 = vpop.f32.mrf.mxu0
    %261 = vdwg.mxu0
    %v262 = vmul.f32 %v259, 0.5
    %v263 = vtanh.pop %v262
    %v264 = vmul.f32 %v263, 0.5
    %v265 = vadd.f32 %v264, 0.5
    %v266 = vpack.c.bf16 %v265, %v265
    %v267 = vld [vmem:[#allocation10] sm:$0xf]
    %v268 = vld [vmem:[#allocation10 + $0x4] sm:$0xf]
    %v269 = vld [vmem:[#allocation10 + $0x8] sm:$0xf]
    %v270 = vld [vmem:[#allocation10 + $0xc] sm:$0xf]
    %v271 = vld [vmem:[#allocation10 + $0x10] sm:$0xf]
    %v272 = vld [vmem:[#allocation10 + $0x14] sm:$0xf]
    %v273 = vld [vmem:[#allocation10 + $0x18] sm:$0xf]
    %v274 = vld [vmem:[#allocation10 + $0x1c] sm:$0xf]
    %v275 = vld [vmem:[#allocation10 + $0x20] sm:$0xf]
    %v276 = vld [vmem:[#allocation10 + $0x24] sm:$0xf]
    %v277 = vld [vmem:[#allocation10 + $0x28] sm:$0xf]
    %v278 = vld [vmem:[#allocation10 + $0x2c] sm:$0xf]
    %v279 = vld [vmem:[#allocation10 + $0x30] sm:$0xf]
    %v280 = vld [vmem:[#allocation10 + $0x34] sm:$0xf]
    %v281 = vld [vmem:[#allocation10 + $0x38] sm:$0xf]
    %v282 = vld [vmem:[#allocation10 + $0x3c] sm:$0xf]
    %v283 = vld [vmem:[%s7] sm:$0x1]
    %v285 = vperm.slane %v283, 0
    %v303 = vunpack.c.l.b16 %v267
    %v304 = vunpack.c.l.b16 %v268
    %v305 = vunpack.c.l.b16 %v269
    %v306 = vunpack.c.l.b16 %v270
    %v307 = vunpack.c.l.b16 %v271
    %v308 = vunpack.c.l.b16 %v272
    %v309 = vunpack.c.l.b16 %v273
    %v310 = vunpack.c.l.b16 %v274
    %v311 = vunpack.c.l.b16 %v275
    %v312 = vunpack.c.l.b16 %v276
    %v313 = vunpack.c.l.b16 %v277
    %v314 = vunpack.c.l.b16 %v278
    %v315 = vunpack.c.l.b16 %v279
    %v316 = vunpack.c.l.b16 %v280
    %v317 = vunpack.c.l.b16 %v281
    %v318 = vunpack.c.l.b16 %v282
    %v319 = vpack.c.b16 %v304, %v303
    %v320 = vpack.c.b16 %v306, %v305
    %v321 = vpack.c.b16 %v308, %v307
    %v322 = vpack.c.b16 %v310, %v309
    %v323 = vpack.c.b16 %v312, %v311
    %v324 = vpack.c.b16 %v314, %v313
    %v325 = vpack.c.b16 %v316, %v315
    %v326 = vpack.c.b16 %v318, %v317
    %335 = vmatpush.bf16.msra.mxu0 %v326
    %336 = vmatpush.bf16.msra.mxu0 %v325
    %337 = vmatpush.bf16.msra.mxu0 %v324
    %338 = vmatpush.bf16.msra.mxu0 %v323
    %339 = vmatpush.bf16.msra.mxu0 %v322
    %340 = vmatpush.bf16.msra.mxu0 %v321
    %341 = vmatpush.bf16.msra.mxu0 %v320
    %342 = vmatpush.bf16.msra.mxu0 %v319
    %343 = vmatmul.bf16.gmra.mxu0 %v266
    %v344 = vpop.f32.mrf.mxu0
    %v345 = vadd.f32 %v285, %v344
    %v346 = vpop.f32.mrf.mxu0
    %347 = vdwg.mxu0
    %v348 = vmul.f32 %v345, 0.5
    %v349 = vtanh.pop %v348
    %v350 = vmul.f32 %v349, 0.5
    %v351 = vadd.f32 %v350, 0.5
    %v352 = vpack.c.bf16 %v351, %v351
    %v353 = vld [vmem:[#allocation11] sm:$0xf]
    %v354 = vld [vmem:[#allocation11 + $0x4] sm:$0xf]
    %v355 = vld [vmem:[#allocation11 + $0x8] sm:$0xf]
    %v356 = vld [vmem:[#allocation11 + $0xc] sm:$0xf]
    %v357 = vld [vmem:[#allocation11 + $0x10] sm:$0xf]
    %v358 = vld [vmem:[#allocation11 + $0x14] sm:$0xf]
    %v359 = vld [vmem:[#allocation11 + $0x18] sm:$0xf]
    %v360 = vld [vmem:[#allocation11 + $0x1c] sm:$0xf]
    %v361 = vld [vmem:[#allocation11 + $0x20] sm:$0xf]
    %v362 = vld [vmem:[#allocation11 + $0x24] sm:$0xf]
    %v363 = vld [vmem:[#allocation11 + $0x28] sm:$0xf]
    %v364 = vld [vmem:[#allocation11 + $0x2c] sm:$0xf]
    %v365 = vld [vmem:[#allocation11 + $0x30] sm:$0xf]
    %v366 = vld [vmem:[#allocation11 + $0x34] sm:$0xf]
    %v367 = vld [vmem:[#allocation11 + $0x38] sm:$0xf]
    %v368 = vld [vmem:[#allocation11 + $0x3c] sm:$0xf]
    %v369 = vld [vmem:[%s9] sm:$0x1]
    %v371 = vperm.slane %v369, 0
    %v389 = vunpack.c.l.b16 %v353
    %v390 = vunpack.c.l.b16 %v354
    %v391 = vunpack.c.l.b16 %v355
    %v392 = vunpack.c.l.b16 %v356
    %v393 = vunpack.c.l.b16 %v357
    %v394 = vunpack.c.l.b16 %v358
    %v395 = vunpack.c.l.b16 %v359
    %v396 = vunpack.c.l.b16 %v360
    %v397 = vunpack.c.l.b16 %v361
    %v398 = vunpack.c.l.b16 %v362
    %v399 = vunpack.c.l.b16 %v363
    %v400 = vunpack.c.l.b16 %v364
    %v401 = vunpack.c.l.b16 %v365
    %v402 = vunpack.c.l.b16 %v366
    %v403 = vunpack.c.l.b16 %v367
    %v404 = vunpack.c.l.b16 %v368
    %v405 = vpack.c.b16 %v390, %v389
    %v406 = vpack.c.b16 %v392, %v391
    %v407 = vpack.c.b16 %v394, %v393
    %v408 = vpack.c.b16 %v396, %v395
    %v409 = vpack.c.b16 %v398, %v397
    %v410 = vpack.c.b16 %v400, %v399
    %v411 = vpack.c.b16 %v402, %v401
    %v412 = vpack.c.b16 %v404, %v403
    %421 = vmatpush.bf16.msra.mxu0 %v412
    %422 = vmatpush.bf16.msra.mxu0 %v411
    %423 = vmatpush.bf16.msra.mxu0 %v410
    %424 = vmatpush.bf16.msra.mxu0 %v409
    %425 = vmatpush.bf16.msra.mxu0 %v408
    %426 = vmatpush.bf16.msra.mxu0 %v407
    %427 = vmatpush.bf16.msra.mxu0 %v406
    %428 = vmatpush.bf16.msra.mxu0 %v405
    %429 = vmatmul.bf16.gmra.mxu0 %v352
    %v430 = vpop.f32.mrf.mxu0
    %v431 = vadd.f32 %v371, %v430
    %v432 = vpop.f32.mrf.mxu0
    %433 = vdwg.mxu0
    %v434 = vxor.u32 %v431, 2147483648
    %v435 = vmul.f32 %v434, 1.442695
    %v436 = vpow.pop %v435
    %v437 = vadd.f32 %v436, 1.0
    %v438 = vrcp.pop %v437
    %v439 = vmul.f32 %v437, %v438
    %v440 = vsub.f32 1.0, %v439
    %v441 = vmul.f32 %v438, %v440
    %v442 = vadd.f32 %v438, %v441
    %vm443 = vweird.f32 %v437
    %vm444 = vweird.f32 %v438
    %vm445 = vmor %vm443, %vm444
    %v446 = vsel %vm445, %v438, %v442
    %v447 = vand.u32 2147483647, %v437
    %vm448 = vcmp.eq.f32.partialorder %v447, 8.507059e+37
    %v449 = vand.u32 %v437, 2147483648
    %v450 = vor.u32 1.1754944e-38, %v449
    %v451 = vsel %vm448, %v450, %v446
    %v452 = vmul.f32 1.0, %v451
    %453 = vst [vmem:[#allocation13] sm:$0xff] %v452
    // Predicated region
    $region66: #{tpu_custom_call.1} parent=1 // pred_check
      _
    $region67: #{tpu_custom_call.1} parent=1 // pred_check_branch
      %455 = sbr.rel (0) target = $region69
    $region68: #{tpu_custom_call.1} parent=1 // pred_region
      %457 = vsyncadd [#allocation4], 0
      %s459 = sshll.u32 [#allocation13], 4
      %s460 = int_to_ptr.vmem [resolvable:$true] %s459
      %s461 = sshll.u32 %s10, 4
      %s462 = int_to_ptr.hbm [resolvable:$true] %s461
      %464 = dma.vmem_to_hbm [thread:$0]  %s460, 128, %s462, [#allocation4]
    $region69: #{tpu_custom_call.1} parent=1 // pred_fallthru
      _
    // Predicated region
    $region70: #{tpu_custom_call.1} parent=1 // pred_check
      _
    $region71: #{tpu_custom_call.1} parent=1 // pred_check_branch
      %466 = sbr.rel (0) target = $region73
    $region72: #{tpu_custom_call.1} parent=1 // pred_region
      %468 = dma.done [#allocation4], 128
    $region73: #{tpu_custom_call.1} parent=1 // pred_fallthru
      _
    %469 = vsyncpa [#allocation3], 1
    %470 = vsyncpa [#allocation6], 1
    %471 = vsyncpa [#allocation9], 1
    %472 = vsyncpa [#allocation12], 1
    %473 = vsyncpa [#allocation4], 1

</llo_original>
